<compile_context>
chip_gen: v6e
topology: v6e:2x2x1
jax: 0.10.0
libtpu: 0.0.40
codegen_flags: <defaults>
</compile_context>

<pallas_src>
import functools

import jax
import jax.numpy as jnp
from jax.experimental import pallas as pl
from jax.experimental.pallas import tpu as pltpu

LANE = 128
SUBLANE = 8


def _round_up(x, m):
    return (x + m - 1) // m * m


def sac_actor_kernel(obs_ref, noise_ref, w1_ref, b1_ref, w2_ref, b2_ref,
                     out_ref, *, action_dim, a_pad):
    # Linear 1 + ReLU: bf16 MXU inputs (obs already streamed as bf16), f32 acc.
    h = jnp.dot(obs_ref[...], w1_ref[...], preferred_element_type=jnp.float32)
    h = jnp.maximum(h + b1_ref[...], 0.0)              # (tb, H) + (1, H) broadcast

    # Fused mu/log_std head: one N = 2*A_pad matmul; split at the 128-lane
    # vreg boundary -> whole-vreg selection, no cross-lane (XLU) relayout.
    o = jnp.dot(h.astype(jnp.bfloat16), w2_ref[...],
                preferred_element_type=jnp.float32) + b2_ref[...]
    mu = o[:, :action_dim]                              # lanes [0, A)
    log_std = o[:, a_pad:a_pad + action_dim]            # lanes [128, 128+A)

    # std = tanh(log_std).exp() + 0.001   (EUP transcendentals, f32)
    std = jnp.exp(jnp.tanh(log_std)) + 0.001

    # TruncatedNormal(mu, std).sample(clip=0.3)
    eps = jnp.clip(noise_ref[...] * std, -0.3, 0.3)
    out_ref[...] = jnp.clip(mu + eps, -1.0 + 1e-6, 1.0 - 1e-6).astype(out_ref.dtype)
    # TODO(synk): if the training path also needs mu / log_std (log_prob), emit
    # them as extra outputs instead of re-running the network.


def prepare_sac_actor_params(w1, b1, w2, b2, action_dim):
    """One-time param prep (outside the hot path).

    Layout is (in_features, out_features), i.e. already transposed vs PyTorch.
      w1: (repr_dim, hidden)   b1: (hidden,)
      w2: (hidden, 2*action)   b2: (2*action,)

    Pads the hidden dim to 128 lanes, fuses the mu/log_std heads into one
    (H_pad, 2*A_pad) weight with the heads placed at lane offsets 0 and A_pad,
    and casts the matmul weights to bf16.  Padded rows/columns are zero, so
    the padded math is exact.
    """
    repr_dim, H = w1.shape
    A = action_dim
    H_pad = _round_up(H, LANE)
    A_pad = _round_up(A, LANE)

    w1_p = jnp.zeros((repr_dim, H_pad), jnp.bfloat16).at[:, :H].set(
        w1.astype(jnp.bfloat16))
    b1_p = jnp.zeros((1, H_pad), jnp.float32).at[:, :H].set(
        b1.astype(jnp.float32)[None, :])

    w2_p = jnp.zeros((H_pad, 2 * A_pad), jnp.bfloat16)
    w2_p = w2_p.at[:H, :A].set(w2[:, :A].astype(jnp.bfloat16))               # mu head
    w2_p = w2_p.at[:H, A_pad:A_pad + A].set(w2[:, A:].astype(jnp.bfloat16))  # log_std head
    b2_p = jnp.zeros((1, 2 * A_pad), jnp.float32)
    b2_p = b2_p.at[:, :A].set(b2[:A].astype(jnp.float32)[None, :])
    b2_p = b2_p.at[:, A_pad:A_pad + A].set(b2[A:].astype(jnp.float32)[None, :])

    # TODO(synk): for production-size repr_dim also pad repr_dim to 128 offline
    # (and feed pre-padded obs) so the first matmul's K dim is lane-aligned.
    return dict(w1=w1_p, b1=b1_p, w2=w2_p, b2=b2_p,
                action_dim=A, action_pad=A_pad)


def sac_actor_forward(obs, params, noise, *, block_b=1024):
    """obs: (B, repr_dim); noise: (B, action_dim) standard-normal.
    Returns sampled action (B, action_dim) f32."""
    B, repr_dim = obs.shape
    H = params["w1"].shape[1]
    A = params["action_dim"]
    A_pad = params["action_pad"]
    assert noise.shape == (B, A)

    obs_bf16 = obs.astype(jnp.bfloat16)        # halve the dominant streamed operand
    noise_f32 = noise.astype(jnp.float32)      # natural (B, A) width — no lane padding

    # --- VMEM budget: resident weights (single-buffered) + double-buffered
    # streamed tiles + f32 intermediates, under an explicit 48 MiB limit
    # (safe on v5e/v6e with 128 MiB physical VMEM and v7x with 64 MiB).
    vmem_limit = 48 * 1024 * 1024
    resident_bytes = (repr_dim * H * 2          # w1 bf16
                      + H * 4                   # b1 f32
                      + H * 2 * A_pad * 2       # fused w2 bf16
                      + 2 * A_pad * 4)          # fused b2 f32
    # Per-batch-row bytes: streamed operands are double-buffered; narrow
    # noise/out tiles still occupy a full 128-lane VMEM row.
    row_stream = 2 * (repr_dim * 2 + LANE * 4 + LANE * 4)
    row_interm = H * 4 + H * 2 + 2 * A_pad * 4 + LANE * 4   # h f32 + h bf16 + o f32 + margin
    budget = (vmem_limit * 3) // 4 - resident_bytes
    if budget < SUBLANE * (row_stream + row_interm):
        # TODO(synk): first-layer weights too large to keep VMEM-resident
        # (v7x-sized repr_dim*H); needs an innermost "arbitrary" K-reduction
        # grid axis with an f32 accumulator + pl.when init/finalize.
        raise NotImplementedError("first-layer weights do not fit in VMEM")
    max_tb = max(SUBLANE, (budget // (row_stream + row_interm)) // SUBLANE * SUBLANE)

    # --- batch tile: as large as the budget allows, capped at the batch and at
    # ceil(B/2) so the grid keeps >= 2 steps when possible (v7x megacore shards
    # the "parallel" axis across its 2 TensorCores); rounded to 128 when large.
    tb = int(min(block_b, max_tb))
    if B > SUBLANE:
        tb = min(tb, _round_up(pl.cdiv(B, 2), SUBLANE))
    tb = min(tb, _round_up(B, SUBLANE))
    tb = (tb // LANE) * LANE if tb >= LANE else _round_up(max(tb, 1), SUBLANE)
    tb = max(tb, SUBLANE)

    grid = (pl.cdiv(B, tb),)   # ragged batch handled by Pallas partial blocks

    kernel = functools.partial(sac_actor_kernel, action_dim=A, a_pad=A_pad)

    cost = pl.CostEstimate(
        flops=2 * B * repr_dim * H + 2 * B * H * 2 * A_pad,
        transcendentals=2 * B * A,                                   # tanh + exp
        bytes_accessed=B * repr_dim * 2 + 2 * B * A * 4 + resident_bytes,
    )

    def build(single_buffer_weights):
        res_kwargs = ({"pipeline_mode": pl.Buffered(1)}
                      if single_buffer_weights else {})
        batched = lambda shape: pl.BlockSpec(shape, lambda i: (i, 0))
        resident = lambda shape: pl.BlockSpec(shape, lambda i: (0, 0), **res_kwargs)
        return pl.pallas_call(
            kernel,
            out_shape=jax.ShapeDtypeStruct((B, A), jnp.float32),
            grid=grid,
            in_specs=[
                batched((tb, repr_dim)),        # obs   (bf16, pipelined over batch)
                batched((tb, A)),               # noise (f32, natural width)
                resident((repr_dim, H)),        # w1    (VMEM-resident, bf16)
                resident((1, H)),               # b1
                resident((H, 2 * A_pad)),       # fused w2 (mu | log_std)
                resident((1, 2 * A_pad)),       # fused b2
            ],
            out_specs=batched((tb, A)),
            compiler_params=pltpu.CompilerParams(
                dimension_semantics=("parallel",),   # shard batch across v7x's 2 TCs
                vmem_limit_bytes=vmem_limit,
            ),
            cost_estimate=cost,
        )

    args = (obs_bf16, noise_f32, params["w1"], params["b1"],
            params["w2"], params["b2"])
    try:
        return build(True)(*args)
    except Exception:
        # pipeline_mode=pl.Buffered(1) not supported by this JAX/libtpu build —
        # fall back to default double-buffered resident weights.
        return build(False)(*args)


def sac_actor_reference(obs, w1, b1, w2, b2, noise, action_dim,
                        matmul_dtype=jnp.bfloat16):
    """Pure-JAX reference (default: same bf16-input / f32-accumulate recipe)."""
    h = jnp.dot(obs.astype(matmul_dtype), w1.astype(matmul_dtype),
                preferred_element_type=jnp.float32) + b1
    h = jnp.maximum(h, 0.0)
    o = jnp.dot(h.astype(matmul_dtype), w2.astype(matmul_dtype),
                preferred_element_type=jnp.float32) + b2
    mu, log_std = o[:, :action_dim], o[:, action_dim:]
    std = jnp.exp(jnp.tanh(log_std)) + 0.001
    x = mu + jnp.clip(noise * std, -0.3, 0.3)
    return jnp.clip(x, -1.0 + 1e-6, 1.0 - 1e-6)


def orthogonal_init(key, shape):
    """Deterministic orthogonal init (mirrors utils.weight_init's orthogonal_)."""
    rows, cols = shape
    a = jax.random.normal(key, (max(rows, cols), min(rows, cols)), jnp.float32)
    q, r = jnp.linalg.qr(a)
    q = q * jnp.sign(jnp.diagonal(r))
    if rows < cols:
        q = q.T
    return q[:rows, :cols].astype(jnp.float32)


if __name__ == "__main__":
    # Small shapes consistent with the module: batch=8, repr_dim=32,
    # hidden_dim=32, action_shape=(4,)
    B, REPR_DIM, HIDDEN_DIM, ACTION_DIM = 8, 32, 32, 4

    key = jax.random.PRNGKey(0)
    k_obs, k_w1, k_w2, k_noise, k_obs2, k_noise2 = jax.random.split(key, 6)

    obs = jax.random.normal(k_obs, (B, REPR_DIM), jnp.float32)
    w1 = orthogonal_init(k_w1, (REPR_DIM, HIDDEN_DIM))
    b1 = jnp.zeros((HIDDEN_DIM,), jnp.float32)
    w2 = orthogonal_init(k_w2, (HIDDEN_DIM, 2 * ACTION_DIM))
    b2 = jnp.zeros((2 * ACTION_DIM,), jnp.float32)
    noise = jax.random.normal(k_noise, (B, ACTION_DIM), jnp.float32)

    params = prepare_sac_actor_params(w1, b1, w2, b2, ACTION_DIM)

    # Single-block path.
    action = sac_actor_forward(obs, params, noise)
    jax.block_until_ready(action)
    assert action.shape == (B, ACTION_DIM)
    ref = sac_actor_reference(obs, w1, b1, w2, b2, noise, ACTION_DIM)
    assert jnp.allclose(action, ref, atol=1e-3, rtol=1e-3), "mismatch vs bf16 reference"
    # Also sanity-check against a full-f32 reference (loose tol: bf16 MXU inputs).
    ref_f32 = sac_actor_reference(obs, w1, b1, w2, b2, noise, ACTION_DIM,
                                  matmul_dtype=jnp.float32)
    assert jnp.allclose(action, ref_f32, atol=1e-1), "far from f32 reference"

    # Multi-block grid with a ragged batch (exercises partial-block pipelining).
    B2 = 20
    obs2 = jax.random.normal(k_obs2, (B2, REPR_DIM), jnp.float32)
    noise2 = jax.random.normal(k_noise2, (B2, ACTION_DIM), jnp.float32)
    action2 = sac_actor_forward(obs2, params, noise2, block_b=8)
    jax.block_until_ready(action2)
    assert action2.shape == (B2, ACTION_DIM)
    ref2 = sac_actor_reference(obs2, w1, b1, w2, b2, noise2, ACTION_DIM)
    assert jnp.allclose(action2, ref2, atol=1e-3, rtol=1e-3), "mismatch vs reference (gridded)"

    print("KERNEL_OK")
</pallas_src>

<mosaic_0001>
module attributes {stable_mosaic.version = 11 : i64} {
  func.func @sac_actor_kernel(%arg0: i32, %arg1: memref<8x32xbf16, #tpu.memory_space<vmem>>, %arg2: memref<8x4xf32, #tpu.memory_space<vmem>>, %arg3: memref<32x128xbf16, #tpu.memory_space<vmem>>, %arg4: memref<1x128xf32, #tpu.memory_space<vmem>>, %arg5: memref<128x256xbf16, #tpu.memory_space<vmem>>, %arg6: memref<1x256xf32, #tpu.memory_space<vmem>>, %arg7: memref<8x4xf32, #tpu.memory_space<vmem>>) attributes {dimension_semantics = [#tpu.dimension_semantics<parallel>], iteration_bounds = array<i64: 1>, scalar_prefetch = 0 : i64, scratch_operands = 0 : i64, tpu.core_type = #tpu.core_type<tc>, window_params = [{transform_indices = @transform_0, window_bounds = array<i64: 8, 32>}, {transform_indices = @transform_1, window_bounds = array<i64: 8, 4>}, {pipeline_mode = #tpu.pipeline_mode<synchronous>, transform_indices = @transform_2, window_bounds = array<i64: 32, 128>}, {pipeline_mode = #tpu.pipeline_mode<synchronous>, transform_indices = @transform_3, window_bounds = array<i64: 1, 128>}, {pipeline_mode = #tpu.pipeline_mode<synchronous>, transform_indices = @transform_4, window_bounds = array<i64: 128, 256>}, {pipeline_mode = #tpu.pipeline_mode<synchronous>, transform_indices = @transform_5, window_bounds = array<i64: 1, 256>}, {transform_indices = @transform_6, window_bounds = array<i64: 8, 4>}]} {
    %c0 = arith.constant 0 : index
    %c0_0 = arith.constant 0 : index
    %0 = vector.load %arg1[%c0, %c0_0] : memref<8x32xbf16, #tpu.memory_space<vmem>>, vector<8x32xbf16>
    %c0_1 = arith.constant 0 : index
    %c0_2 = arith.constant 0 : index
    %1 = vector.load %arg3[%c0_1, %c0_2] : memref<32x128xbf16, #tpu.memory_space<vmem>>, vector<32x128xbf16>
    %cst = arith.constant dense<0.000000e+00> : vector<8x128xf32>
    %2 = tpu.matmul %0, %1, %cst {dimension_numbers = #tpu.dot_dimension_numbers<[1], [0], [0], [1], [0, 0, 1, 1], [], []>} : vector<8x32xbf16>, vector<32x128xbf16>, vector<8x128xf32> -> vector<8x128xf32>
    %c0_3 = arith.constant 0 : index
    %c0_4 = arith.constant 0 : index
    %3 = vector.load %arg4[%c0_3, %c0_4] : memref<1x128xf32, #tpu.memory_space<vmem>>, vector<1x128xf32>
    %4 = vector.broadcast %3 : vector<1x128xf32> to vector<8x128xf32>
    %5 = arith.addf %2, %4 : vector<8x128xf32>
    %cst_5 = arith.constant 0.000000e+00 : f32
    %6 = vector.broadcast %cst_5 : f32 to vector<8x128xf32>
    %7 = arith.maximumf %5, %6 : vector<8x128xf32>
    %8 = arith.truncf %7 : vector<8x128xf32> to vector<8x128xbf16>
    %c0_6 = arith.constant 0 : index
    %c0_7 = arith.constant 0 : index
    %9 = vector.load %arg5[%c0_6, %c0_7] : memref<128x256xbf16, #tpu.memory_space<vmem>>, vector<128x256xbf16>
    %cst_8 = arith.constant dense<0.000000e+00> : vector<8x256xf32>
    %10 = tpu.matmul %8, %9, %cst_8 {dimension_numbers = #tpu.dot_dimension_numbers<[1], [0], [0], [1], [0, 0, 1, 1], [], []>} : vector<8x128xbf16>, vector<128x256xbf16>, vector<8x256xf32> -> vector<8x256xf32>
    %c0_9 = arith.constant 0 : index
    %c0_10 = arith.constant 0 : index
    %11 = vector.load %arg6[%c0_9, %c0_10] : memref<1x256xf32, #tpu.memory_space<vmem>>, vector<1x256xf32>
    %12 = vector.broadcast %11 : vector<1x256xf32> to vector<8x256xf32>
    %13 = arith.addf %10, %12 : vector<8x256xf32>
    %14 = vector.extract_strided_slice %13 {offsets = [0, 0], sizes = [8, 4], strides = [1, 1]} : vector<8x256xf32> to vector<8x4xf32>
    %15 = vector.extract_strided_slice %13 {offsets = [0, 128], sizes = [8, 4], strides = [1, 1]} : vector<8x256xf32> to vector<8x4xf32>
    %16 = math.tanh %15 : vector<8x4xf32>
    %17 = math.exp %16 : vector<8x4xf32>
    %cst_11 = arith.constant 1.000000e-03 : f32
    %18 = vector.broadcast %cst_11 : f32 to vector<8x4xf32>
    %19 = arith.addf %17, %18 : vector<8x4xf32>
    %c0_12 = arith.constant 0 : index
    %c0_13 = arith.constant 0 : index
    %20 = vector.load %arg2[%c0_12, %c0_13] : memref<8x4xf32, #tpu.memory_space<vmem>>, vector<8x4xf32>
    %21 = arith.mulf %20, %19 : vector<8x4xf32>
    %cst_14 = arith.constant -3.000000e-01 : f32
    %cst_15 = arith.constant 3.000000e-01 : f32
    %22 = vector.broadcast %cst_14 : f32 to vector<8x4xf32>
    %23 = arith.maximumf %22, %21 : vector<8x4xf32>
    %24 = vector.broadcast %cst_15 : f32 to vector<8x4xf32>
    %25 = arith.minimumf %24, %23 : vector<8x4xf32>
    %26 = arith.addf %14, %25 : vector<8x4xf32>
    %cst_16 = arith.constant -0.999998986 : f32
    %cst_17 = arith.constant 0.999998986 : f32
    %27 = vector.broadcast %cst_16 : f32 to vector<8x4xf32>
    %28 = arith.maximumf %27, %26 : vector<8x4xf32>
    %29 = vector.broadcast %cst_17 : f32 to vector<8x4xf32>
    %30 = arith.minimumf %29, %28 : vector<8x4xf32>
    %c0_18 = arith.constant 0 : index
    %c0_19 = arith.constant 0 : index
    %31 = vector.load %arg7[%c0_18, %c0_19] : memref<8x4xf32, #tpu.memory_space<vmem>>, vector<8x4xf32>
    tpu.vector_store %arg7[%c0_18, %c0_19], %30 {strides = array<i32>} : memref<8x4xf32, #tpu.memory_space<vmem>>, vector<8x4xf32>,
    return
  }
  func.func @transform_0(%arg0: i32) -> (i32, i32) {
    %c0_i32 = arith.constant 0 : i32
    %c0_i32_0 = arith.constant 0 : i32
    return %arg0, %c0_i32 : i32, i32
  }
  func.func @transform_1(%arg0: i32) -> (i32, i32) {
    %c0_i32 = arith.constant 0 : i32
    %c0_i32_0 = arith.constant 0 : i32
    return %arg0, %c0_i32 : i32, i32
  }
  func.func @transform_2(%arg0: i32) -> (i32, i32) {
    %c0_i32 = arith.constant 0 : i32
    %c0_i32_0 = arith.constant 0 : i32
    %c0_i32_1 = arith.constant 0 : i32
    return %c0_i32, %c0_i32_0 : i32, i32
  }
  func.func @transform_3(%arg0: i32) -> (i32, i32) {
    %c0_i32 = arith.constant 0 : i32
    %c0_i32_0 = arith.constant 0 : i32
    %c0_i32_1 = arith.constant 0 : i32
    return %c0_i32, %c0_i32_0 : i32, i32
  }
  func.func @transform_4(%arg0: i32) -> (i32, i32) {
    %c0_i32 = arith.constant 0 : i32
    %c0_i32_0 = arith.constant 0 : i32
    %c0_i32_1 = arith.constant 0 : i32
    return %c0_i32, %c0_i32_0 : i32, i32
  }
  func.func @transform_5(%arg0: i32) -> (i32, i32) {
    %c0_i32 = arith.constant 0 : i32
    %c0_i32_0 = arith.constant 0 : i32
    %c0_i32_1 = arith.constant 0 : i32
    return %c0_i32, %c0_i32_0 : i32, i32
  }
  func.func @transform_6(%arg0: i32) -> (i32, i32) {
    %c0_i32 = arith.constant 0 : i32
    %c0_i32_0 = arith.constant 0 : i32
    return %arg0, %c0_i32 : i32, i32
  }
}

module attributes {stable_mosaic.version = 11 : i64} {
  func.func @sac_actor_kernel(%arg0: i32, %arg1: memref<8x32xbf16, #tpu.memory_space<vmem>>, %arg2: memref<8x4xf32, #tpu.memory_space<vmem>>, %arg3: memref<32x128xbf16, #tpu.memory_space<vmem>>, %arg4: memref<1x128xf32, #tpu.memory_space<vmem>>, %arg5: memref<128x256xbf16, #tpu.memory_space<vmem>>, %arg6: memref<1x256xf32, #tpu.memory_space<vmem>>, %arg7: memref<8x4xf32, #tpu.memory_space<vmem>>) attributes {dimension_semantics = [#tpu.dimension_semantics<parallel>], iteration_bounds = array<i64: 1>, scalar_prefetch = 0 : i64, scratch_operands = 0 : i64, tpu.core_type = #tpu.core_type<tc>, window_params = [{transform_indices = @transform_0, window_bounds = array<i64: 8, 32>}, {transform_indices = @transform_1, window_bounds = array<i64: 8, 4>}, {pipeline_mode = #tpu.pipeline_mode<synchronous>, transform_indices = @transform_2, window_bounds = array<i64: 32, 128>}, {pipeline_mode = #tpu.pipeline_mode<synchronous>, transform_indices = @transform_3, window_bounds = array<i64: 1, 128>}, {pipeline_mode = #tpu.pipeline_mode<synchronous>, transform_indices = @transform_4, window_bounds = array<i64: 128, 256>}, {pipeline_mode = #tpu.pipeline_mode<synchronous>, transform_indices = @transform_5, window_bounds = array<i64: 1, 256>}, {transform_indices = @transform_6, window_bounds = array<i64: 8, 4>}]} {
    %c0 = arith.constant 0 : index
    %c0_0 = arith.constant 0 : index
    %0 = vector.load %arg1[%c0, %c0_0] : memref<8x32xbf16, #tpu.memory_space<vmem>>, vector<8x32xbf16>
    %c0_1 = arith.constant 0 : index
    %c0_2 = arith.constant 0 : index
    %1 = vector.load %arg3[%c0_1, %c0_2] : memref<32x128xbf16, #tpu.memory_space<vmem>>, vector<32x128xbf16>
    %cst = arith.constant dense<0.000000e+00> : vector<8x128xf32>
    %2 = tpu.matmul %0, %1, %cst {dimension_numbers = #tpu.dot_dimension_numbers<[1], [0], [0], [1], [0, 0, 1, 1], [], []>} : vector<8x32xbf16>, vector<32x128xbf16>, vector<8x128xf32> -> vector<8x128xf32>
    %c0_3 = arith.constant 0 : index
    %c0_4 = arith.constant 0 : index
    %3 = vector.load %arg4[%c0_3, %c0_4] : memref<1x128xf32, #tpu.memory_space<vmem>>, vector<1x128xf32>
    %4 = vector.broadcast %3 : vector<1x128xf32> to vector<8x128xf32>
    %5 = arith.addf %2, %4 : vector<8x128xf32>
    %cst_5 = arith.constant 0.000000e+00 : f32
    %6 = vector.broadcast %cst_5 : f32 to vector<8x128xf32>
    %7 = arith.maximumf %5, %6 : vector<8x128xf32>
    %8 = arith.truncf %7 : vector<8x128xf32> to vector<8x128xbf16>
    %c0_6 = arith.constant 0 : index
    %c0_7 = arith.constant 0 : index
    %9 = vector.load %arg5[%c0_6, %c0_7] : memref<128x256xbf16, #tpu.memory_space<vmem>>, vector<128x256xbf16>
    %cst_8 = arith.constant dense<0.000000e+00> : vector<8x256xf32>
    %10 = tpu.matmul %8, %9, %cst_8 {dimension_numbers = #tpu.dot_dimension_numbers<[1], [0], [0], [1], [0, 0, 1, 1], [], []>} : vector<8x128xbf16>, vector<128x256xbf16>, vector<8x256xf32> -> vector<8x256xf32>
    %c0_9 = arith.constant 0 : index
    %c0_10 = arith.constant 0 : index
    %11 = vector.load %arg6[%c0_9, %c0_10] : memref<1x256xf32, #tpu.memory_space<vmem>>, vector<1x256xf32>
    %12 = vector.broadcast %11 : vector<1x256xf32> to vector<8x256xf32>
    %13 = arith.addf %10, %12 : vector<8x256xf32>
    %14 = vector.extract_strided_slice %13 {offsets = [0, 0], sizes = [8, 4], strides = [1, 1]} : vector<8x256xf32> to vector<8x4xf32>
    %15 = vector.extract_strided_slice %13 {offsets = [0, 128], sizes = [8, 4], strides = [1, 1]} : vector<8x256xf32> to vector<8x4xf32>
    %16 = math.tanh %15 : vector<8x4xf32>
    %17 = math.exp %16 : vector<8x4xf32>
    %cst_11 = arith.constant 1.000000e-03 : f32
    %18 = vector.broadcast %cst_11 : f32 to vector<8x4xf32>
    %19 = arith.addf %17, %18 : vector<8x4xf32>
    %c0_12 = arith.constant 0 : index
    %c0_13 = arith.constant 0 : index
    %20 = vector.load %arg2[%c0_12, %c0_13] : memref<8x4xf32, #tpu.memory_space<vmem>>, vector<8x4xf32>
    %21 = arith.mulf %20, %19 : vector<8x4xf32>
    %cst_14 = arith.constant -3.000000e-01 : f32
    %cst_15 = arith.constant 3.000000e-01 : f32
    %22 = vector.broadcast %cst_14 : f32 to vector<8x4xf32>
    %23 = arith.maximumf %22, %21 : vector<8x4xf32>
    %24 = vector.broadcast %cst_15 : f32 to vector<8x4xf32>
    %25 = arith.minimumf %24, %23 : vector<8x4xf32>
    %26 = arith.addf %14, %25 : vector<8x4xf32>
    %cst_16 = arith.constant -0.999998986 : f32
    %cst_17 = arith.constant 0.999998986 : f32
    %27 = vector.broadcast %cst_16 : f32 to vector<8x4xf32>
    %28 = arith.maximumf %27, %26 : vector<8x4xf32>
    %29 = vector.broadcast %cst_17 : f32 to vector<8x4xf32>
    %30 = arith.minimumf %29, %28 : vector<8x4xf32>
    %c0_18 = arith.constant 0 : index
    %c0_19 = arith.constant 0 : index
    %31 = vector.load %arg7[%c0_18, %c0_19] : memref<8x4xf32, #tpu.memory_space<vmem>>, vector<8x4xf32>
    tpu.vector_store %arg7[%c0_18, %c0_19], %30 {strides = array<i32>} : memref<8x4xf32, #tpu.memory_space<vmem>>, vector<8x4xf32>,
    return
  }
  func.func @transform_0(%arg0: i32) -> (i32, i32) {
    %c0_i32 = arith.constant 0 : i32
    %c0_i32_0 = arith.constant 0 : i32
    return %arg0, %c0_i32 : i32, i32
  }
  func.func @transform_1(%arg0: i32) -> (i32, i32) {
    %c0_i32 = arith.constant 0 : i32
    %c0_i32_0 = arith.constant 0 : i32
    return %arg0, %c0_i32 : i32, i32
  }
  func.func @transform_2(%arg0: i32) -> (i32, i32) {
    %c0_i32 = arith.constant 0 : i32
    %c0_i32_0 = arith.constant 0 : i32
    %c0_i32_1 = arith.constant 0 : i32
    return %c0_i32, %c0_i32_0 : i32, i32
  }
  func.func @transform_3(%arg0: i32) -> (i32, i32) {
    %c0_i32 = arith.constant 0 : i32
    %c0_i32_0 = arith.constant 0 : i32
    %c0_i32_1 = arith.constant 0 : i32
    return %c0_i32, %c0_i32_0 : i32, i32
  }
  func.func @transform_4(%arg0: i32) -> (i32, i32) {
    %c0_i32 = arith.constant 0 : i32
    %c0_i32_0 = arith.constant 0 : i32
    %c0_i32_1 = arith.constant 0 : i32
    return %c0_i32, %c0_i32_0 : i32, i32
  }
  func.func @transform_5(%arg0: i32) -> (i32, i32) {
    %c0_i32 = arith.constant 0 : i32
    %c0_i32_0 = arith.constant 0 : i32
    %c0_i32_1 = arith.constant 0 : i32
    return %c0_i32, %c0_i32_0 : i32, i32
  }
  func.func @transform_6(%arg0: i32) -> (i32, i32) {
    %c0_i32 = arith.constant 0 : i32
    %c0_i32_0 = arith.constant 0 : i32
    return %arg0, %c0_i32 : i32, i32
  }
}

</mosaic_0001>

<llo_original>
// kernel: tpu_custom_call.1
$region0: #{tpu_custom_call.1}
  #allocation0 [shape = 'u32[]', space=smem, size = 0x4, offset = 0x4, fixed_abs, tag = 'smem constant byte address 0x4 - core index']
  #allocation1 [shape = 'u32[144,128]{1,0:T(1,128)}', space=vmem, size = 0x12000, scoped, tag = 'internal scratch']
  %s0 = inlined_call_operand.vmem [shape: bf16[8,32], index: 0, kind: input, shape index: {}]
  %s1 = inlined_call_operand.vmem [shape: f32[8,4], index: 1, kind: input, shape index: {}]
  %s2 = inlined_call_operand.hbm [shape: bf16[32,128], index: 2, kind: input, shape index: {}]
  %s3 = inlined_call_operand.vmem [shape: f32[1,128], index: 3, kind: input, shape index: {}]
  %s4 = inlined_call_operand.hbm [shape: bf16[128,256], index: 4, kind: input, shape index: {}]
  %s5 = inlined_call_operand.vmem [shape: f32[1,256], index: 5, kind: input, shape index: {}]
  %s6 = inlined_call_operand.vmem [shape: f32[8,4], index: 6, kind: output, shape index: {}]
  %s7 = sld [smem:[#allocation0]]
  $region42: #{tpu_custom_call.1} parent=0
    _
  %s9 = ssub.s32 1, %s7
  %s10 = scalar_select 0, %s9, %s7
  $region1: #{tpu_custom_call.1} parent=0
    #allocation2 [shape = 'u8[8192]{0}', space=vmem, size = 0x2000, scoped, tag = 'input window, operand 2, single buffered']
    #allocation3 [shape = 's32[1]{0}', space=sflag, size = 0x4, scoped, tag = 'scoped memory for tpu_custom_call.1']
    #allocation4 [shape = 'u8[65536]{0}', space=vmem, size = 0x10000, scoped, tag = 'input window, operand 4, single buffered']
    #allocation5 [shape = 's32[1]{0}', space=sflag, size = 0x4, scoped, tag = 'scoped memory for tpu_custom_call.1']
    %11 = vsyncpa [#allocation3], 0
    %12 = vsyncpa [#allocation5], 0
    // Predicated region
    $region2: #{tpu_custom_call.1} parent=1 // pred_check
      _
    $region3: #{tpu_custom_call.1} parent=1 // pred_check_branch
      %14 = sbr.rel (0) target = $region5
    $region4: #{tpu_custom_call.1} parent=1 // pred_region
      _
    $region5: #{tpu_custom_call.1} parent=1 // pred_fallthru
      _
    // Predicated region
    $region6: #{tpu_custom_call.1} parent=1 // pred_check
      _
    $region7: #{tpu_custom_call.1} parent=1 // pred_check_branch
      %16 = sbr.rel (0) target = $region9
    $region8: #{tpu_custom_call.1} parent=1 // pred_region
      _
    $region9: #{tpu_custom_call.1} parent=1 // pred_fallthru
      _
    // Predicated region
    $region10: #{tpu_custom_call.1} parent=1 // pred_check
      _
    $region11: #{tpu_custom_call.1} parent=1 // pred_check_branch
      %18 = sbr.rel (0) target = $region13
    $region12: #{tpu_custom_call.1} parent=1 // pred_region
      %s20 = ssub.s32 256, 256
      %21 = vsyncadd [#allocation3], %s20
      %s22 = sshll.u32 [#allocation2], 4
      %s23 = int_to_ptr.vmem [resolvable:$true] %s22
      %28 = dma.hbm_to_vmem [thread:$0]  %s2, 256, %s23, [#allocation3], 64, 64, 4
    $region13: #{tpu_custom_call.1} parent=1 // pred_fallthru
      _
    // Predicated region
    $region14: #{tpu_custom_call.1} parent=1 // pred_check
      _
    $region15: #{tpu_custom_call.1} parent=1 // pred_check_branch
      %30 = sbr.rel (0) target = $region17
    $region16: #{tpu_custom_call.1} parent=1 // pred_region
      _
    $region17: #{tpu_custom_call.1} parent=1 // pred_fallthru
      _
    // Predicated region
    $region18: #{tpu_custom_call.1} parent=1 // pred_check
      _
    $region19: #{tpu_custom_call.1} parent=1 // pred_check_branch
      %32 = sbr.rel (0) target = $region21
    $region20: #{tpu_custom_call.1} parent=1 // pred_region
      %s34 = ssub.s32 2048, 2048
      %35 = vsyncadd [#allocation5], %s34
      %s36 = sshll.u32 [#allocation4], 4
      %s37 = int_to_ptr.vmem [resolvable:$true] %s36
      %42 = dma.hbm_to_vmem [thread:$0]  %s4, 2048, %s37, [#allocation5], 128, 128, 8
    $region21: #{tpu_custom_call.1} parent=1 // pred_fallthru
      _
    // Predicated region
    $region22: #{tpu_custom_call.1} parent=1 // pred_check
      _
    $region23: #{tpu_custom_call.1} parent=1 // pred_check_branch
      %44 = sbr.rel (0) target = $region25
    $region24: #{tpu_custom_call.1} parent=1 // pred_region
      _
    $region25: #{tpu_custom_call.1} parent=1 // pred_fallthru
      _
    // Predicated region
    $region26: #{tpu_custom_call.1} parent=1 // pred_check
      _
    $region27: #{tpu_custom_call.1} parent=1 // pred_check_branch
      %46 = sbr.rel (0) target = $region29
    $region28: #{tpu_custom_call.1} parent=1 // pred_region
      %47 = dma.done [#allocation3], 256
    $region29: #{tpu_custom_call.1} parent=1 // pred_fallthru
      _
    // Predicated region
    $region30: #{tpu_custom_call.1} parent=1 // pred_check
      _
    $region31: #{tpu_custom_call.1} parent=1 // pred_check_branch
      %49 = sbr.rel (0) target = $region33
    $region32: #{tpu_custom_call.1} parent=1 // pred_region
      %50 = dma.done [#allocation5], 2048
    $region33: #{tpu_custom_call.1} parent=1 // pred_fallthru
      _
    %v52 = vld [vmem:[%s0] sm:$0xf]
    %v53 = vld [vmem:[#allocation2] sm:$0xf]
    %v54 = vld [vmem:[#allocation2 + $0x4] sm:$0xf]
    %v55 = vld [vmem:[#allocation2 + $0x8] sm:$0xf]
    %v56 = vld [vmem:[#allocation2 + $0xc] sm:$0xf]
    %v57 = vld [vmem:[%s3] sm:$0x1]
    %v59 = vlaneseq
    %v60 = vshrl.u32 %v59, 7
    %v61 = vsub.s32 0, %v60
    %v62 = vrot.slane %v57, %v61
    %v68 = vunpack.c.l.b16 %v53
    %v69 = vunpack.c.l.b16 %v54
    %v70 = vunpack.c.l.b16 %v55
    %v71 = vunpack.c.l.b16 %v56
    %v72 = vpack.c.b16 %v69, %v68
    %v73 = vpack.c.b16 %v71, %v70
    %vm76 = vcmask 261120
    %v78 = vsel %vm76, %v52, 0
    %80 = vmatprep.subr.bf16.mxu0 0
    %81 = vmatpush1.bf16.msra.mxu0 0
    %82 = vmatprep.subr.bf16.mxu0 0
    %83 = vmatpush1.bf16.msra.mxu0 0
    %84 = vmatprep.subr.bf16.mxu0 0
    %85 = vmatpush1.bf16.msra.mxu0 0
    %86 = vmatprep.subr.bf16.mxu0 0
    %87 = vmatpush1.bf16.msra.mxu0 0
    %88 = vmatprep.subr.bf16.mxu0 0
    %89 = vmatpush1.bf16.msra.mxu0 0
    %90 = vmatprep.subr.bf16.mxu0 0
    %91 = vmatpush1.bf16.msra.mxu0 0
    %92 = vmatprep.subr.bf16.mxu0 0
    %93 = vmatpush1.bf16.msra.mxu0 %v73
    %94 = vmatprep.subr.bf16.mxu0 0
    %95 = vmatpush1.bf16.msra.mxu0 %v72
    %96 = vmatprep.subr.bf16.mxu0 0
    %97 = vmatpush2.bf16.msra.mxu0 0
    %98 = vmatprep.subr.bf16.mxu0 0
    %99 = vmatpush2.bf16.msra.mxu0 0
    %100 = vmatprep.subr.bf16.mxu0 0
    %101 = vmatpush2.bf16.msra.mxu0 0
    %102 = vmatprep.subr.bf16.mxu0 0
    %103 = vmatpush2.bf16.msra.mxu0 0
    %104 = vmatprep.subr.bf16.mxu0 0
    %105 = vmatpush2.bf16.msra.mxu0 0
    %106 = vmatprep.subr.bf16.mxu0 0
    %107 = vmatpush2.bf16.msra.mxu0 0
    %108 = vmatprep.subr.bf16.mxu0 0
    %109 = vmatpush2.bf16.msra.mxu0 0
    %110 = vmatprep.subr.bf16.mxu0 0
    %111 = vmatpush2.bf16.msra.mxu0 0
    %112 = vmatprep.mubr.bf16.mxu0 0
    %113 = vmatmul.mubr.bf16.gmra.mxu0 %v78
    %v114 = vpop.f32.mrf.mxu0
    %v115 = vadd.f32 %v62, %v114
    %v116 = vpop.f32.mrf.mxu0
    %v117 = vpop.f32.mrf.mxu0
    %v118 = vpop.f32.mrf.mxu0
    %119 = vdwg.mxu0
    %v120 = vmax.f32 %v115, 0.0
    %v121 = vpack.c.bf16 %v120, %v120
    %v122 = vld [vmem:[#allocation4] sm:$0xff]
    %v123 = vld [vmem:[#allocation4 + $0x8] sm:$0xff]
    %v124 = vld [vmem:[#allocation4 + $0x10] sm:$0xff]
    %v125 = vld [vmem:[#allocation4 + $0x18] sm:$0xff]
    %v126 = vld [vmem:[#allocation4 + $0x20] sm:$0xff]
    %v127 = vld [vmem:[#allocation4 + $0x28] sm:$0xff]
    %v128 = vld [vmem:[#allocation4 + $0x30] sm:$0xff]
    %v129 = vld [vmem:[#allocation4 + $0x38] sm:$0xff]
    %v130 = vld [vmem:[#allocation4 + $0x40] sm:$0xff]
    %v131 = vld [vmem:[#allocation4 + $0x48] sm:$0xff]
    %v132 = vld [vmem:[#allocation4 + $0x50] sm:$0xff]
    %v133 = vld [vmem:[#allocation4 + $0x58] sm:$0xff]
    %v134 = vld [vmem:[#allocation4 + $0x60] sm:$0xff]
    %v135 = vld [vmem:[#allocation4 + $0x68] sm:$0xff]
    %v136 = vld [vmem:[#allocation4 + $0x70] sm:$0xff]
    %v137 = vld [vmem:[#allocation4 + $0x78] sm:$0xff]
    %v138 = vld [vmem:[%s5] sm:$0x3]
    %v140 = vlaneseq
    %v141 = vshrl.u32 %v140, 7
    %v142 = vsub.s32 0, %v141
    %v143 = vrot.slane %v138, %v142
    %v144 = vlaneseq
    %v145 = vshrl.u32 %v144, 7
    %v146 = vsub.s32 1, %v145
    %v147 = vrot.slane %v138, %v146
    %v166 = vunpack.c.l.b16 %v122
    %v167 = vunpack.c.h.b16 %v122
    %v168 = vunpack.c.l.b16 %v123
    %v169 = vunpack.c.h.b16 %v123
    %v170 = vunpack.c.l.b16 %v124
    %v171 = vunpack.c.h.b16 %v124
    %v172 = vunpack.c.l.b16 %v125
    %v173 = vunpack.c.h.b16 %v125
    %v174 = vunpack.c.l.b16 %v126
    %v175 = vunpack.c.h.b16 %v126
    %v176 = vunpack.c.l.b16 %v127
    %v177 = vunpack.c.h.b16 %v127
    %v178 = vunpack.c.l.b16 %v128
    %v179 = vunpack.c.h.b16 %v128
    %v180 = vunpack.c.l.b16 %v129
    %v181 = vunpack.c.h.b16 %v129
    %v182 = vunpack.c.l.b16 %v130
    %v183 = vunpack.c.h.b16 %v130
    %v184 = vunpack.c.l.b16 %v131
    %v185 = vunpack.c.h.b16 %v131
    %v186 = vunpack.c.l.b16 %v132
    %v187 = vunpack.c.h.b16 %v132
    %v188 = vunpack.c.l.b16 %v133
    %v189 = vunpack.c.h.b16 %v133
    %v190 = vunpack.c.l.b16 %v134
    %v191 = vunpack.c.h.b16 %v134
    %v192 = vunpack.c.l.b16 %v135
    %v193 = vunpack.c.h.b16 %v135
    %v194 = vunpack.c.l.b16 %v136
    %v195 = vunpack.c.h.b16 %v136
    %v196 = vunpack.c.l.b16 %v137
    %v197 = vunpack.c.h.b16 %v137
    %v198 = vpack.c.b16 %v168, %v166
    %v199 = vpack.c.b16 %v169, %v167
    %v200 = vpack.c.b16 %v172, %v170
    %v201 = vpack.c.b16 %v173, %v171
    %v202 = vpack.c.b16 %v176, %v174
    %v203 = vpack.c.b16 %v177, %v175
    %v204 = vpack.c.b16 %v180, %v178
    %v205 = vpack.c.b16 %v181, %v179
    %v206 = vpack.c.b16 %v184, %v182
    %v207 = vpack.c.b16 %v185, %v183
    %v208 = vpack.c.b16 %v188, %v186
    %v209 = vpack.c.b16 %v189, %v187
    %v210 = vpack.c.b16 %v192, %v190
    %v211 = vpack.c.b16 %v193, %v191
    %v212 = vpack.c.b16 %v196, %v194
    %v213 = vpack.c.b16 %v197, %v195
    %230 = vmatprep.subr.bf16.mxu0 %v213
    %231 = vmatpush1.bf16.msra.mxu0 %v212
    %232 = vmatprep.subr.bf16.mxu0 %v211
    %233 = vmatpush1.bf16.msra.mxu0 %v210
    %234 = vmatprep.subr.bf16.mxu0 %v209
    %235 = vmatpush1.bf16.msra.mxu0 %v208
    %236 = vmatprep.subr.bf16.mxu0 %v207
    %237 = vmatpush1.bf16.msra.mxu0 %v206
    %238 = vmatprep.subr.bf16.mxu0 %v205
    %239 = vmatpush1.bf16.msra.mxu0 %v204
    %240 = vmatprep.subr.bf16.mxu0 %v203
    %241 = vmatpush1.bf16.msra.mxu0 %v202
    %242 = vmatprep.subr.bf16.mxu0 %v201
    %243 = vmatpush1.bf16.msra.mxu0 %v200
    %244 = vmatprep.subr.bf16.mxu0 %v199
    %245 = vmatpush1.bf16.msra.mxu0 %v198
    %246 = vmatprep.subr.bf16.mxu0 0
    %247 = vmatpush2.bf16.msra.mxu0 0
    %248 = vmatprep.subr.bf16.mxu0 0
    %249 = vmatpush2.bf16.msra.mxu0 0
    %250 = vmatprep.subr.bf16.mxu0 0
    %251 = vmatpush2.bf16.msra.mxu0 0
    %252 = vmatprep.subr.bf16.mxu0 0
    %253 = vmatpush2.bf16.msra.mxu0 0
    %254 = vmatprep.subr.bf16.mxu0 0
    %255 = vmatpush2.bf16.msra.mxu0 0
    %256 = vmatprep.subr.bf16.mxu0 0
    %257 = vmatpush2.bf16.msra.mxu0 0
    %258 = vmatprep.subr.bf16.mxu0 0
    %259 = vmatpush2.bf16.msra.mxu0 0
    %260 = vmatprep.subr.bf16.mxu0 0
    %261 = vmatpush2.bf16.msra.mxu0 0
    %262 = vmatprep.mubr.bf16.mxu0 0
    %263 = vmatmul.mubr.bf16.gmra.mxu0 %v121
    %v264 = vpop.f32.mrf.mxu0
    %v265 = vadd.f32 %v143, %v264
    %v266 = vpop.f32.mrf.mxu0
    %v267 = vadd.f32 %v147, %v266
    %v268 = vpop.f32.mrf.mxu0
    %v269 = vpop.f32.mrf.mxu0
    %270 = vdwg.mxu0
    %v271 = vtanh.pop %v267
    %v272 = vmul.f32 %v271, 1.442695
    %v273 = vpow.pop %v272
    %v274 = vadd.f32 %v273, 0.001
    %v275 = vld [vmem:[%s1] sm:$0xff]
    %v276 = vmul.f32 %v275, %v274
    %v277 = vmax.f32 %v276, -0.3
    %v278 = vmin.f32 %v277, 0.3
    %v279 = vadd.f32 %v265, %v278
    %v280 = vmax.f32 %v279, -0.999999
    %v281 = vmin.f32 %v280, 0.999999
    %vm282 = vcmask 31744
    %283 = vst.msk [vmem:[%s6] sm:$0xff] %vm282, %v281
    // Predicated region
    $region34: #{tpu_custom_call.1} parent=1 // pred_check
      _
    $region35: #{tpu_custom_call.1} parent=1 // pred_check_branch
      %285 = sbr.rel (0) target = $region37
    $region36: #{tpu_custom_call.1} parent=1 // pred_region
      _
    $region37: #{tpu_custom_call.1} parent=1 // pred_fallthru
      _
    // Predicated region
    $region38: #{tpu_custom_call.1} parent=1 // pred_check
      _
    $region39: #{tpu_custom_call.1} parent=1 // pred_check_branch
      %287 = sbr.rel (0) target = $region41
    $region40: #{tpu_custom_call.1} parent=1 // pred_region
      _
    $region41: #{tpu_custom_call.1} parent=1 // pred_fallthru
      _
    %288 = vsyncpa [#allocation3], 1
    %289 = vsyncpa [#allocation5], 1

// kernel: tpu_custom_call.1
$region0: #{tpu_custom_call.1}
  #allocation0 [shape = 'u32[]', space=smem, size = 0x4, offset = 0x4, fixed_abs, tag = 'smem constant byte address 0x4 - core index']
  #allocation1 [shape = 'u32[144,128]{1,0:T(1,128)}', space=vmem, size = 0x12000, scoped, tag = 'internal scratch']
  %s0 = inlined_call_operand.vmem [shape: bf16[8,32], index: 0, kind: input, shape index: {}]
  %s1 = inlined_call_operand.vmem [shape: f32[8,4], index: 1, kind: input, shape index: {}]
  %s2 = inlined_call_operand.hbm [shape: bf16[32,128], index: 2, kind: input, shape index: {}]
  %s3 = inlined_call_operand.vmem [shape: f32[1,128], index: 3, kind: input, shape index: {}]
  %s4 = inlined_call_operand.hbm [shape: bf16[128,256], index: 4, kind: input, shape index: {}]
  %s5 = inlined_call_operand.vmem [shape: f32[1,256], index: 5, kind: input, shape index: {}]
  %s6 = inlined_call_operand.vmem [shape: f32[8,4], index: 6, kind: output, shape index: {}]
  %s7 = sld [smem:[#allocation0]]
  $region42: #{tpu_custom_call.1} parent=0
    _
  %s9 = ssub.s32 1, %s7
  %s10 = scalar_select 0, %s9, %s7
  $region1: #{tpu_custom_call.1} parent=0
    #allocation2 [shape = 'u8[8192]{0}', space=vmem, size = 0x2000, scoped, tag = 'input window, operand 2, single buffered']
    #allocation3 [shape = 's32[1]{0}', space=sflag, size = 0x4, scoped, tag = 'scoped memory for tpu_custom_call.1']
    #allocation4 [shape = 'u8[65536]{0}', space=vmem, size = 0x10000, scoped, tag = 'input window, operand 4, single buffered']
    #allocation5 [shape = 's32[1]{0}', space=sflag, size = 0x4, scoped, tag = 'scoped memory for tpu_custom_call.1']
    %11 = vsyncpa [#allocation3], 0
    %12 = vsyncpa [#allocation5], 0
    // Predicated region
    $region2: #{tpu_custom_call.1} parent=1 // pred_check
      _
    $region3: #{tpu_custom_call.1} parent=1 // pred_check_branch
      %14 = sbr.rel (0) target = $region5
    $region4: #{tpu_custom_call.1} parent=1 // pred_region
      _
    $region5: #{tpu_custom_call.1} parent=1 // pred_fallthru
      _
    // Predicated region
    $region6: #{tpu_custom_call.1} parent=1 // pred_check
      _
    $region7: #{tpu_custom_call.1} parent=1 // pred_check_branch
      %16 = sbr.rel (0) target = $region9
    $region8: #{tpu_custom_call.1} parent=1 // pred_region
      _
    $region9: #{tpu_custom_call.1} parent=1 // pred_fallthru
      _
    // Predicated region
    $region10: #{tpu_custom_call.1} parent=1 // pred_check
      _
    $region11: #{tpu_custom_call.1} parent=1 // pred_check_branch
      %18 = sbr.rel (0) target = $region13
    $region12: #{tpu_custom_call.1} parent=1 // pred_region
      %s20 = ssub.s32 256, 256
      %21 = vsyncadd [#allocation3], %s20
      %s22 = sshll.u32 [#allocation2], 4
      %s23 = int_to_ptr.vmem [resolvable:$true] %s22
      %28 = dma.hbm_to_vmem [thread:$0]  %s2, 256, %s23, [#allocation3], 64, 64, 4
    $region13: #{tpu_custom_call.1} parent=1 // pred_fallthru
      _
    // Predicated region
    $region14: #{tpu_custom_call.1} parent=1 // pred_check
      _
    $region15: #{tpu_custom_call.1} parent=1 // pred_check_branch
      %30 = sbr.rel (0) target = $region17
    $region16: #{tpu_custom_call.1} parent=1 // pred_region
      _
    $region17: #{tpu_custom_call.1} parent=1 // pred_fallthru
      _
    // Predicated region
    $region18: #{tpu_custom_call.1} parent=1 // pred_check
      _
    $region19: #{tpu_custom_call.1} parent=1 // pred_check_branch
      %32 = sbr.rel (0) target = $region21
    $region20: #{tpu_custom_call.1} parent=1 // pred_region
      %s34 = ssub.s32 2048, 2048
      %35 = vsyncadd [#allocation5], %s34
      %s36 = sshll.u32 [#allocation4], 4
      %s37 = int_to_ptr.vmem [resolvable:$true] %s36
      %42 = dma.hbm_to_vmem [thread:$0]  %s4, 2048, %s37, [#allocation5], 128, 128, 8
    $region21: #{tpu_custom_call.1} parent=1 // pred_fallthru
      _
    // Predicated region
    $region22: #{tpu_custom_call.1} parent=1 // pred_check
      _
    $region23: #{tpu_custom_call.1} parent=1 // pred_check_branch
      %44 = sbr.rel (0) target = $region25
    $region24: #{tpu_custom_call.1} parent=1 // pred_region
      _
    $region25: #{tpu_custom_call.1} parent=1 // pred_fallthru
      _
    // Predicated region
    $region26: #{tpu_custom_call.1} parent=1 // pred_check
      _
    $region27: #{tpu_custom_call.1} parent=1 // pred_check_branch
      %46 = sbr.rel (0) target = $region29
    $region28: #{tpu_custom_call.1} parent=1 // pred_region
      %47 = dma.done [#allocation3], 256
    $region29: #{tpu_custom_call.1} parent=1 // pred_fallthru
      _
    // Predicated region
    $region30: #{tpu_custom_call.1} parent=1 // pred_check
      _
    $region31: #{tpu_custom_call.1} parent=1 // pred_check_branch
      %49 = sbr.rel (0) target = $region33
    $region32: #{tpu_custom_call.1} parent=1 // pred_region
      %50 = dma.done [#allocation5], 2048
    $region33: #{tpu_custom_call.1} parent=1 // pred_fallthru
      _
    %v52 = vld [vmem:[%s0] sm:$0xf]
    %v53 = vld [vmem:[#allocation2] sm:$0xf]
    %v54 = vld [vmem:[#allocation2 + $0x4] sm:$0xf]
    %v55 = vld [vmem:[#allocation2 + $0x8] sm:$0xf]
    %v56 = vld [vmem:[#allocation2 + $0xc] sm:$0xf]
    %v57 = vld [vmem:[%s3] sm:$0x1]
    %v59 = vlaneseq
    %v60 = vshrl.u32 %v59, 7
    %v61 = vsub.s32 0, %v60
    %v62 = vrot.slane %v57, %v61
    %v68 = vunpack.c.l.b16 %v53
    %v69 = vunpack.c.l.b16 %v54
    %v70 = vunpack.c.l.b16 %v55
    %v71 = vunpack.c.l.b16 %v56
    %v72 = vpack.c.b16 %v69, %v68
    %v73 = vpack.c.b16 %v71, %v70
    %vm76 = vcmask 261120
    %v78 = vsel %vm76, %v52, 0
    %80 = vmatprep.subr.bf16.mxu0 0
    %81 = vmatpush1.bf16.msra.mxu0 0
    %82 = vmatprep.subr.bf16.mxu0 0
    %83 = vmatpush1.bf16.msra.mxu0 0
    %84 = vmatprep.subr.bf16.mxu0 0
    %85 = vmatpush1.bf16.msra.mxu0 0
    %86 = vmatprep.subr.bf16.mxu0 0
    %87 = vmatpush1.bf16.msra.mxu0 0
    %88 = vmatprep.subr.bf16.mxu0 0
    %89 = vmatpush1.bf16.msra.mxu0 0
    %90 = vmatprep.subr.bf16.mxu0 0
    %91 = vmatpush1.bf16.msra.mxu0 0
    %92 = vmatprep.subr.bf16.mxu0 0
    %93 = vmatpush1.bf16.msra.mxu0 %v73
    %94 = vmatprep.subr.bf16.mxu0 0
    %95 = vmatpush1.bf16.msra.mxu0 %v72
    %96 = vmatprep.subr.bf16.mxu0 0
    %97 = vmatpush2.bf16.msra.mxu0 0
    %98 = vmatprep.subr.bf16.mxu0 0
    %99 = vmatpush2.bf16.msra.mxu0 0
    %100 = vmatprep.subr.bf16.mxu0 0
    %101 = vmatpush2.bf16.msra.mxu0 0
    %102 = vmatprep.subr.bf16.mxu0 0
    %103 = vmatpush2.bf16.msra.mxu0 0
    %104 = vmatprep.subr.bf16.mxu0 0
    %105 = vmatpush2.bf16.msra.mxu0 0
    %106 = vmatprep.subr.bf16.mxu0 0
    %107 = vmatpush2.bf16.msra.mxu0 0
    %108 = vmatprep.subr.bf16.mxu0 0
    %109 = vmatpush2.bf16.msra.mxu0 0
    %110 = vmatprep.subr.bf16.mxu0 0
    %111 = vmatpush2.bf16.msra.mxu0 0
    %112 = vmatprep.mubr.bf16.mxu0 0
    %113 = vmatmul.mubr.bf16.gmra.mxu0 %v78
    %v114 = vpop.f32.mrf.mxu0
    %v115 = vadd.f32 %v62, %v114
    %v116 = vpop.f32.mrf.mxu0
    %v117 = vpop.f32.mrf.mxu0
    %v118 = vpop.f32.mrf.mxu0
    %119 = vdwg.mxu0
    %v120 = vmax.f32 %v115, 0.0
    %v121 = vpack.c.bf16 %v120, %v120
    %v122 = vld [vmem:[#allocation4] sm:$0xff]
    %v123 = vld [vmem:[#allocation4 + $0x8] sm:$0xff]
    %v124 = vld [vmem:[#allocation4 + $0x10] sm:$0xff]
    %v125 = vld [vmem:[#allocation4 + $0x18] sm:$0xff]
    %v126 = vld [vmem:[#allocation4 + $0x20] sm:$0xff]
    %v127 = vld [vmem:[#allocation4 + $0x28] sm:$0xff]
    %v128 = vld [vmem:[#allocation4 + $0x30] sm:$0xff]
    %v129 = vld [vmem:[#allocation4 + $0x38] sm:$0xff]
    %v130 = vld [vmem:[#allocation4 + $0x40] sm:$0xff]
    %v131 = vld [vmem:[#allocation4 + $0x48] sm:$0xff]
    %v132 = vld [vmem:[#allocation4 + $0x50] sm:$0xff]
    %v133 = vld [vmem:[#allocation4 + $0x58] sm:$0xff]
    %v134 = vld [vmem:[#allocation4 + $0x60] sm:$0xff]
    %v135 = vld [vmem:[#allocation4 + $0x68] sm:$0xff]
    %v136 = vld [vmem:[#allocation4 + $0x70] sm:$0xff]
    %v137 = vld [vmem:[#allocation4 + $0x78] sm:$0xff]
    %v138 = vld [vmem:[%s5] sm:$0x3]
    %v140 = vlaneseq
    %v141 = vshrl.u32 %v140, 7
    %v142 = vsub.s32 0, %v141
    %v143 = vrot.slane %v138, %v142
    %v144 = vlaneseq
    %v145 = vshrl.u32 %v144, 7
    %v146 = vsub.s32 1, %v145
    %v147 = vrot.slane %v138, %v146
    %v166 = vunpack.c.l.b16 %v122
    %v167 = vunpack.c.h.b16 %v122
    %v168 = vunpack.c.l.b16 %v123
    %v169 = vunpack.c.h.b16 %v123
    %v170 = vunpack.c.l.b16 %v124
    %v171 = vunpack.c.h.b16 %v124
    %v172 = vunpack.c.l.b16 %v125
    %v173 = vunpack.c.h.b16 %v125
    %v174 = vunpack.c.l.b16 %v126
    %v175 = vunpack.c.h.b16 %v126
    %v176 = vunpack.c.l.b16 %v127
    %v177 = vunpack.c.h.b16 %v127
    %v178 = vunpack.c.l.b16 %v128
    %v179 = vunpack.c.h.b16 %v128
    %v180 = vunpack.c.l.b16 %v129
    %v181 = vunpack.c.h.b16 %v129
    %v182 = vunpack.c.l.b16 %v130
    %v183 = vunpack.c.h.b16 %v130
    %v184 = vunpack.c.l.b16 %v131
    %v185 = vunpack.c.h.b16 %v131
    %v186 = vunpack.c.l.b16 %v132
    %v187 = vunpack.c.h.b16 %v132
    %v188 = vunpack.c.l.b16 %v133
    %v189 = vunpack.c.h.b16 %v133
    %v190 = vunpack.c.l.b16 %v134
    %v191 = vunpack.c.h.b16 %v134
    %v192 = vunpack.c.l.b16 %v135
    %v193 = vunpack.c.h.b16 %v135
    %v194 = vunpack.c.l.b16 %v136
    %v195 = vunpack.c.h.b16 %v136
    %v196 = vunpack.c.l.b16 %v137
    %v197 = vunpack.c.h.b16 %v137
    %v198 = vpack.c.b16 %v168, %v166
    %v199 = vpack.c.b16 %v169, %v167
    %v200 = vpack.c.b16 %v172, %v170
    %v201 = vpack.c.b16 %v173, %v171
    %v202 = vpack.c.b16 %v176, %v174
    %v203 = vpack.c.b16 %v177, %v175
    %v204 = vpack.c.b16 %v180, %v178
    %v205 = vpack.c.b16 %v181, %v179
    %v206 = vpack.c.b16 %v184, %v182
    %v207 = vpack.c.b16 %v185, %v183
    %v208 = vpack.c.b16 %v188, %v186
    %v209 = vpack.c.b16 %v189, %v187
    %v210 = vpack.c.b16 %v192, %v190
    %v211 = vpack.c.b16 %v193, %v191
    %v212 = vpack.c.b16 %v196, %v194
    %v213 = vpack.c.b16 %v197, %v195
    %230 = vmatprep.subr.bf16.mxu0 %v213
    %231 = vmatpush1.bf16.msra.mxu0 %v212
    %232 = vmatprep.subr.bf16.mxu0 %v211
    %233 = vmatpush1.bf16.msra.mxu0 %v210
    %234 = vmatprep.subr.bf16.mxu0 %v209
    %235 = vmatpush1.bf16.msra.mxu0 %v208
    %236 = vmatprep.subr.bf16.mxu0 %v207
    %237 = vmatpush1.bf16.msra.mxu0 %v206
    %238 = vmatprep.subr.bf16.mxu0 %v205
    %239 = vmatpush1.bf16.msra.mxu0 %v204
    %240 = vmatprep.subr.bf16.mxu0 %v203
    %241 = vmatpush1.bf16.msra.mxu0 %v202
    %242 = vmatprep.subr.bf16.mxu0 %v201
    %243 = vmatpush1.bf16.msra.mxu0 %v200
    %244 = vmatprep.subr.bf16.mxu0 %v199
    %245 = vmatpush1.bf16.msra.mxu0 %v198
    %246 = vmatprep.subr.bf16.mxu0 0
    %247 = vmatpush2.bf16.msra.mxu0 0
    %248 = vmatprep.subr.bf16.mxu0 0
    %249 = vmatpush2.bf16.msra.mxu0 0
    %250 = vmatprep.subr.bf16.mxu0 0
    %251 = vmatpush2.bf16.msra.mxu0 0
    %252 = vmatprep.subr.bf16.mxu0 0
    %253 = vmatpush2.bf16.msra.mxu0 0
    %254 = vmatprep.subr.bf16.mxu0 0
    %255 = vmatpush2.bf16.msra.mxu0 0
    %256 = vmatprep.subr.bf16.mxu0 0
    %257 = vmatpush2.bf16.msra.mxu0 0
    %258 = vmatprep.subr.bf16.mxu0 0
    %259 = vmatpush2.bf16.msra.mxu0 0
    %260 = vmatprep.subr.bf16.mxu0 0
    %261 = vmatpush2.bf16.msra.mxu0 0
    %262 = vmatprep.mubr.bf16.mxu0 0
    %263 = vmatmul.mubr.bf16.gmra.mxu0 %v121
    %v264 = vpop.f32.mrf.mxu0
    %v265 = vadd.f32 %v143, %v264
    %v266 = vpop.f32.mrf.mxu0
    %v267 = vadd.f32 %v147, %v266
    %v268 = vpop.f32.mrf.mxu0
    %v269 = vpop.f32.mrf.mxu0
    %270 = vdwg.mxu0
    %v271 = vtanh.pop %v267
    %v272 = vmul.f32 %v271, 1.442695
    %v273 = vpow.pop %v272
    %v274 = vadd.f32 %v273, 0.001
    %v275 = vld [vmem:[%s1] sm:$0xff]
    %v276 = vmul.f32 %v275, %v274
    %v277 = vmax.f32 %v276, -0.3
    %v278 = vmin.f32 %v277, 0.3
    %v279 = vadd.f32 %v265, %v278
    %v280 = vmax.f32 %v279, -0.999999
    %v281 = vmin.f32 %v280, 0.999999
    %vm282 = vcmask 31744
    %283 = vst.msk [vmem:[%s6] sm:$0xff] %vm282, %v281
    // Predicated region
    $region34: #{tpu_custom_call.1} parent=1 // pred_check
      _
    $region35: #{tpu_custom_call.1} parent=1 // pred_check_branch
      %285 = sbr.rel (0) target = $region37
    $region36: #{tpu_custom_call.1} parent=1 // pred_region
      _
    $region37: #{tpu_custom_call.1} parent=1 // pred_fallthru
      _
    // Predicated region
    $region38: #{tpu_custom_call.1} parent=1 // pred_check
      _
    $region39: #{tpu_custom_call.1} parent=1 // pred_check_branch
      %287 = sbr.rel (0) target = $region41
    $region40: #{tpu_custom_call.1} parent=1 // pred_region
      _
    $region41: #{tpu_custom_call.1} parent=1 // pred_fallthru
      _
    %288 = vsyncpa [#allocation3], 1
    %289 = vsyncpa [#allocation5], 1

</llo_original>
